<compile_context>
chip_gen: v6e
topology: v6e:2x2x1
jax: 0.10.0
libtpu: 0.0.40
codegen_flags: <defaults>
</compile_context>

<pallas_src>
import jax
import jax.numpy as jnp
from jax.experimental import pallas as pl
from jax.experimental.pallas import tpu as pltpu


def _normalization_kernel(x_ref, off_ref, o_ref):
    # x_ref / o_ref: VMEM tile (br, bc); off_ref: VMEM column (br, 1).
    # Single VPU subtract per vreg; the offset column broadcasts along lanes.
    o_ref[...] = x_ref[...] - off_ref[...]


def _sublane_align(dtype):
    # Packed native tile is (8,128) f32, (16,128) bf16, (32,128) int8/fp8.
    itemsize = jnp.dtype(dtype).itemsize
    return max(8, 32 // itemsize)


def _pick_lane_block(cols, target):
    """Lane (last) dim block: full extent if it fits, else the largest
    multiple of 128 <= target that divides `cols` evenly (no ragged tail
    block -> unmasked stores); fall back to the largest multiple of 128."""
    if cols <= target:
        return cols
    start = max(128, (target // 128) * 128)
    for bc in range(start, 127, -128):
        if cols % bc == 0:
            return bc
    return start


def _pick_sublane_block(rows, align, target):
    """Sublane dim block: full extent if it fits, else the largest multiple
    of `align` <= target, preferring one that divides `rows` evenly."""
    if rows <= target:
        return rows
    start = max(align, (target // align) * align)
    for br in range(start, align - 1, -align):
        if rows % br == 0:
            return br
    return start


def _vmem_budget():
    """Generation-aware (tile_bytes, vmem_limit_bytes)."""
    try:
        vmem = pltpu.get_tpu_info().vmem_capacity_bytes
    except Exception:
        vmem = 64 * 1024 * 1024  # conservative (v7x per-TC VMEM)
    tile = min(vmem // 8, 8 * 1024 * 1024)          # 8 MiB on v5e/v6e/v7x
    limit = min((vmem * 3) // 4, 64 * 1024 * 1024)  # 48 MiB on v7x, 64 MiB else
    return tile, limit


def normalization(x, mean, std):
    """y = x - mean/std, with mean/std broadcast over (N, H, W).

    x:    (N, C, H, W)
    mean: (C,)
    std:  (C,)
    """
    N, C, H, W = x.shape
    rows, cols = N * C, H * W
    itemsize = jnp.dtype(x.dtype).itemsize

    # Wrapper-side layout plumbing: lane-dense 2D view of x and a per-row
    # offset column (mean/std repeated over the batch dimension).
    x2 = x.reshape(rows, cols)
    offset = (mean / std).astype(x.dtype)            # (C,)  O(C) wrapper op
    off_col = jnp.tile(offset, N).reshape(rows, 1)   # (N*C, 1)

    tile_bytes, vmem_limit = _vmem_budget()

    # Keep >= ~8 grid steps when the array is large so both v7x TCs stream
    # and the pipeline can double-buffer; never shrink below 1 MiB tiles.
    total_bytes = rows * cols * itemsize
    tile_bytes = max(1 * 1024 * 1024, min(tile_bytes, total_bytes // 8 or tile_bytes))
    target_elems = max(128, tile_bytes // itemsize)

    align = _sublane_align(x.dtype)
    bc = _pick_lane_block(cols, min(cols, target_elems))           # lane dim
    br = _pick_sublane_block(rows, align, max(align, target_elems // bc))

    # Grid: rows outer, cols inner — the offset block index (i, 0) is constant
    # across the inner axis, so Pallas does not re-DMA the offset column.
    grid = (pl.cdiv(rows, br), pl.cdiv(cols, bc))

    y2 = pl.pallas_call(
        _normalization_kernel,
        out_shape=jax.ShapeDtypeStruct((rows, cols), x.dtype),
        grid=grid,
        in_specs=[
            pl.BlockSpec((br, bc), lambda i, j: (i, j)),   # x tile
            pl.BlockSpec((br, 1), lambda i, j: (i, 0)),    # per-row offset
        ],
        out_specs=pl.BlockSpec((br, bc), lambda i, j: (i, j)),
        compiler_params=pltpu.CompilerParams(
            dimension_semantics=("parallel", "parallel"),
            # ~8 MiB tiles * (2 in + 2 out double buffers) + offset column
            # stays under this on every chip (48 MiB on v7x, 64 MiB on
            # v5e/v6e), and it overrides v5e's 16 MiB scoped default.
            vmem_limit_bytes=vmem_limit,
        ),
    )(x2, off_col)

    return y2.reshape(N, C, H, W)


if __name__ == "__main__":
    # Deterministic parameter init (module shapes: (1, C, 1, 1) -> (C,))
    n_channels = 3
    mean = jnp.asarray([0.485, 0.456, 0.406], dtype=jnp.float32)
    std = jnp.asarray([0.229, 0.224, 0.225], dtype=jnp.float32)

    # Deterministic example input, NCHW
    key = jax.random.PRNGKey(0)
    x = jax.random.normal(key, (2, n_channels, 16, 16), dtype=jnp.float32)

    y = normalization(x, mean, std)
    y = jax.block_until_ready(y)

    # Pure-JAX reference (matches PyTorch operator precedence: x - (mean/std))
    ref = x - (mean / std).reshape(1, n_channels, 1, 1)
    assert y.shape == x.shape and y.dtype == x.dtype
    assert jnp.allclose(y, ref, atol=1e-6, rtol=1e-6)

    print("KERNEL_OK")
</pallas_src>

<mosaic_0001>
module attributes {stable_mosaic.version = 11 : i64} {
  func.func @_normalization_kernel(%arg0: i32, %arg1: i32, %arg2: memref<6x256xf32, #tpu.memory_space<vmem>>, %arg3: memref<6x1xf32, #tpu.memory_space<vmem>>, %arg4: memref<6x256xf32, #tpu.memory_space<vmem>>) attributes {dimension_semantics = [#tpu.dimension_semantics<parallel>, #tpu.dimension_semantics<parallel>], iteration_bounds = array<i64: 1, 1>, scalar_prefetch = 0 : i64, scratch_operands = 0 : i64, tpu.core_type = #tpu.core_type<tc>, window_params = [{transform_indices = @transform_0, window_bounds = array<i64: 6, 256>}, {transform_indices = @transform_1, window_bounds = array<i64: 6, 1>}, {transform_indices = @transform_2, window_bounds = array<i64: 6, 256>}]} {
    %c0 = arith.constant 0 : index
    %c0_0 = arith.constant 0 : index
    %0 = vector.load %arg2[%c0, %c0_0] : memref<6x256xf32, #tpu.memory_space<vmem>>, vector<6x256xf32>
    %c0_1 = arith.constant 0 : index
    %c0_2 = arith.constant 0 : index
    %1 = vector.load %arg3[%c0_1, %c0_2] : memref<6x1xf32, #tpu.memory_space<vmem>>, vector<6x1xf32>
    %2 = vector.broadcast %1 : vector<6x1xf32> to vector<6x256xf32>
    %3 = arith.subf %0, %2 : vector<6x256xf32>
    %c0_3 = arith.constant 0 : index
    %c0_4 = arith.constant 0 : index
    %4 = vector.load %arg4[%c0_3, %c0_4] : memref<6x256xf32, #tpu.memory_space<vmem>>, vector<6x256xf32>
    tpu.vector_store %arg4[%c0_3, %c0_4], %3 {strides = array<i32>} : memref<6x256xf32, #tpu.memory_space<vmem>>, vector<6x256xf32>,
    return
  }
  func.func @transform_0(%arg0: i32, %arg1: i32) -> (i32, i32) {
    %c0_i32 = arith.constant 0 : i32
    return %arg0, %arg1 : i32, i32
  }
  func.func @transform_1(%arg0: i32, %arg1: i32) -> (i32, i32) {
    %c0_i32 = arith.constant 0 : i32
    %c0_i32_0 = arith.constant 0 : i32
    return %arg0, %c0_i32 : i32, i32
  }
  func.func @transform_2(%arg0: i32, %arg1: i32) -> (i32, i32) {
    %c0_i32 = arith.constant 0 : i32
    return %arg0, %arg1 : i32, i32
  }
}

</mosaic_0001>

<llo_original>
// kernel: tpu_custom_call.1
$region0: #{tpu_custom_call.1}
  #allocation0 [shape = 'u32[]', space=smem, size = 0x4, offset = 0x4, fixed_abs, tag = 'smem constant byte address 0x4 - core index']
  #allocation1 [shape = 'u32[144,128]{1,0:T(1,128)}', space=vmem, size = 0x12000, scoped, tag = 'internal scratch']
  %s0 = inlined_call_operand.hbm [shape: f32[6,256], index: 0, kind: input, shape index: {}]
  %s1 = inlined_call_operand.vmem [shape: f32[6,1], index: 1, kind: input, shape index: {}]
  %s2 = inlined_call_operand.hbm [shape: f32[6,256], index: 2, kind: output, shape index: {}]
  %s3 = sld [smem:[#allocation0]]
  $region22: #{tpu_custom_call.1} parent=0
    _
  %s5 = ssub.s32 1, %s3
  %s6 = scalar_select 0, %s5, %s3
  $region1: #{tpu_custom_call.1} parent=0
    #allocation2 [shape = 'u8[8192]{0}', space=vmem, size = 0x2000, scoped, tag = 'input window, operand 0, single buffered']
    #allocation3 [shape = 's32[1]{0}', space=sflag, size = 0x4, scoped, tag = 'scoped memory for tpu_custom_call.1']
    #allocation4 [shape = 's32[1]{0}', space=sflag, size = 0x4, scoped, tag = 'scoped memory for tpu_custom_call.1']
    #allocation5 [shape = 'u8[8192]{0}', space=vmem, size = 0x2000, scoped, tag = 'output window, operand 0, single buffered']
    %7 = vsyncpa [#allocation3], 0
    %8 = vsyncpa [#allocation4], 0
    // Predicated region
    $region2: #{tpu_custom_call.1} parent=1 // pred_check
      _
    $region3: #{tpu_custom_call.1} parent=1 // pred_check_branch
      %10 = sbr.rel (0) target = $region5
    $region4: #{tpu_custom_call.1} parent=1 // pred_region
      %s12 = ssub.s32 256, 256
      %13 = vsyncadd [#allocation3], %s12
      %s15 = sshll.u32 [#allocation2], 4
      %s16 = int_to_ptr.vmem [resolvable:$true] %s15
      %18 = dma.hbm_to_vmem [thread:$0]  %s0, 256, %s16, [#allocation3]
    $region5: #{tpu_custom_call.1} parent=1 // pred_fallthru
      _
    // Predicated region
    $region6: #{tpu_custom_call.1} parent=1 // pred_check
      _
    $region7: #{tpu_custom_call.1} parent=1 // pred_check_branch
      %20 = sbr.rel (0) target = $region9
    $region8: #{tpu_custom_call.1} parent=1 // pred_region
      _
    $region9: #{tpu_custom_call.1} parent=1 // pred_fallthru
      _
    // Predicated region
    $region10: #{tpu_custom_call.1} parent=1 // pred_check
      _
    $region11: #{tpu_custom_call.1} parent=1 // pred_check_branch
      %22 = sbr.rel (0) target = $region13
    $region12: #{tpu_custom_call.1} parent=1 // pred_region
      %23 = dma.done [#allocation3], 256
    $region13: #{tpu_custom_call.1} parent=1 // pred_fallthru
      _
    %v24 = vld [vmem:[#allocation2] sm:$0x3f]
    %v25 = vld [vmem:[#allocation2 + $0x8] sm:$0x3f]
    %v26 = vld [vmem:[%s1] sm:$0x3f]
    %28 = vset.pattern.permute.xlu0 0
    %29 = vperm.xlu0 %28, %v26
    %v30 = vpop.permute.xlu0 %29
    %v32 = vsub.f32 %v24, %v30
    %v33 = vsub.f32 %v25, %v30
    %34 = vst [vmem:[#allocation5] sm:$0x3f] %v32
    %35 = vst [vmem:[#allocation5 + $0x8] sm:$0x3f] %v33
    // Predicated region
    $region14: #{tpu_custom_call.1} parent=1 // pred_check
      _
    $region15: #{tpu_custom_call.1} parent=1 // pred_check_branch
      %37 = sbr.rel (0) target = $region17
    $region16: #{tpu_custom_call.1} parent=1 // pred_region
      %s39 = ssub.s32 256, 256
      %40 = vsyncadd [#allocation4], %s39
      %s42 = sshll.u32 [#allocation5], 4
      %s43 = int_to_ptr.vmem [resolvable:$true] %s42
      %45 = dma.vmem_to_hbm [thread:$0]  %s43, 256, %s2, [#allocation4]
    $region17: #{tpu_custom_call.1} parent=1 // pred_fallthru
      _
    // Predicated region
    $region18: #{tpu_custom_call.1} parent=1 // pred_check
      _
    $region19: #{tpu_custom_call.1} parent=1 // pred_check_branch
      %47 = sbr.rel (0) target = $region21
    $region20: #{tpu_custom_call.1} parent=1 // pred_region
      %48 = dma.done [#allocation4], 256
    $region21: #{tpu_custom_call.1} parent=1 // pred_fallthru
      _
    %49 = vsyncpa [#allocation3], 1
    %50 = vsyncpa [#allocation4], 1

</llo_original>
